<compile_context>
chip_gen: v7x
topology: tpu7x:2x2x1
jax: 0.10.0
libtpu: 0.0.40
codegen_flags: <defaults>
</compile_context>

<pallas_src>
import functools

import jax
import jax.numpy as jnp
from jax.experimental import pallas as pl
from jax.experimental.pallas import tpu as pltpu

_LANE = 128      # lane width (last-dim granularity)
_SUBLANE = 8     # sublane granularity (second-to-last dim)


def _round_up(x, m):
    return ((x + m - 1) // m) * m


def _vmem_capacity_bytes():
    try:
        return int(pltpu.get_tpu_info().vmem_capacity_bytes)
    except Exception:
        return 64 << 20  # conservative fallback (v7x per-core VMEM)


# ----------------------------------------------------------------------------
# Kernel
# ----------------------------------------------------------------------------
def _make_mlp_kernel(num_layers):
    """Fused MLP forward over one batch tile.

    Ref order: (x, w0, b0, w1, b1, ..., w_{L-1}, b_{L-1}, out).
    Weights are (in_pad, out_pad) bf16 with out_pad a multiple of 128, so
    every matmul / bias add / ReLU is lane-dense; only the true output_dim
    columns of the last layer are stored to HBM.
    """

    def kernel(*refs):
        x_ref = refs[0]
        out_ref = refs[-1]
        h = x_ref[...]                                    # (tb, d_in) f32
        for l in range(num_layers):                       # static unroll
            w = refs[1 + 2 * l][...]                      # (d_l, d_{l+1}) bf16
            b = refs[2 + 2 * l][...]                      # (1,  d_{l+1}) f32
            # bf16 operands feed the MXU natively; accumulate in f32.
            h = jnp.dot(h.astype(jnp.bfloat16), w,
                        preferred_element_type=jnp.float32) + b
            if l < num_layers - 1:
                h = jnp.maximum(h, 0.0)                   # ReLU in f32 (VPU)
        # 128-wide tile is in-kernel only: store just the real output columns.
        out_ref[...] = h[:, :out_ref.shape[1]].astype(out_ref.dtype)

    return kernel


# ----------------------------------------------------------------------------
# One-time parameter preparation (off the hot path)
# ----------------------------------------------------------------------------
def prepare_params(torch_params, input_dim):
    """torch_params: list of (w (out,in), b (out,)) in nn.Linear layout.

    Returns lane-padded, pre-transposed params:
      w_l: (d_l, d_{l+1}) zero-padded, stored bf16 (MXU-native, halves VMEM),
      b_l: (1,  d_{l+1}) zero-padded, kept f32 (added to the f32 accumulator),
    plus the padded dim chain [input_dim, pad128(h1), ..., pad128(out)].
    Zero padding is numerically exact: padded lanes evaluate to ReLU(0)+0 = 0.
    """
    dims = [int(input_dim)]
    for (w, _) in torch_params:
        dims.append(_round_up(int(w.shape[0]), _LANE))

    padded = []
    for l, (w, b) in enumerate(torch_params):
        out_f, in_f = int(w.shape[0]), int(w.shape[1])
        wp = jnp.zeros((dims[l], dims[l + 1]), jnp.float32)
        wp = wp.at[:in_f, :out_f].set(jnp.asarray(w, jnp.float32).T)
        bp = jnp.zeros((1, dims[l + 1]), jnp.float32)
        bp = bp.at[0, :out_f].set(jnp.asarray(b, jnp.float32))
        padded.append((wp.astype(jnp.bfloat16), bp))
    return tuple(padded), tuple(dims)


# ----------------------------------------------------------------------------
# Batch-tile selection
# ----------------------------------------------------------------------------
def _pick_batch_tile(B, dims, d_in, output_dim, block_b=None):
    if block_b is None:
        # Size the tile so double-buffered x/out tiles plus the widest live
        # in-kernel activation land in a few MiB of VMEM (amortizes the
        # ~0.35 us per-grid-step overhead, keeps MXU M large).
        widest = max(dims)
        per_row = 4 * (2 * d_in + 2 * output_dim + 2 * widest)
        block_b = (4 << 20) // max(per_row, 1)
        block_b = max(_SUBLANE, min(4096, (block_b // _SUBLANE) * _SUBLANE))
    # Balance tiles (avoid an almost-all-padding last tile) and, for large
    # batches, force >= 2 grid steps so v7x's 2 TensorCores both get work.
    n_tiles = max(1, pl.cdiv(B, block_b))
    if B >= 256:
        n_tiles = max(n_tiles, 2)
    tb = _round_up(pl.cdiv(B, n_tiles), _SUBLANE)
    b_pad = _round_up(B, tb)
    return tb, b_pad


# ----------------------------------------------------------------------------
# Forward
# ----------------------------------------------------------------------------
def mlp_forward(x, padded_params, dims, output_dim, block_b=None):
    """Forward pass. x: (B, input_dim) float32. Returns (B, output_dim) f32."""
    B, d_in = x.shape
    num_layers = len(padded_params)

    tb, b_pad = _pick_batch_tile(B, dims, d_in, output_dim, block_b)
    if b_pad != B:
        x = jnp.pad(x, ((0, b_pad - B), (0, 0)))
    grid = (b_pad // tb,)

    # x/out tiled over batch; weights/biases resident (constant block index).
    in_specs = [pl.BlockSpec((tb, d_in), lambda i: (i, 0))]
    flat_params = []
    for (w, b) in padded_params:
        # TODO(synk): pipeline_mode=pl.Buffered(1) for these constant blocks
        # and real N/K weight tiling once hidden_layer_sizes grow beyond what
        # fits double-buffered in v7x's 64 MiB VMEM.
        in_specs.append(pl.BlockSpec(w.shape, lambda i: (0, 0)))
        in_specs.append(pl.BlockSpec(b.shape, lambda i: (0, 0)))
        flat_params.extend([w, b])
    # Output: only the true output_dim columns ever touch HBM.
    out_specs = pl.BlockSpec((tb, output_dim), lambda i: (i, 0))

    # VMEM budget: double-buffered x/out tiles + resident weights (counted 2x
    # conservatively) + in-kernel activation temporaries + headroom.
    w_bytes = sum(int(w.size) * w.dtype.itemsize + int(b.size) * b.dtype.itemsize
                  for (w, b) in padded_params)
    act_bytes = num_layers * tb * max(dims) * 4
    est = (2 * (tb * d_in * 4 + tb * output_dim * 4)
           + 2 * w_bytes + act_bytes + (2 << 20))
    cap = _vmem_capacity_bytes()
    vmem_limit = int(min(max(est, 32 << 20), max(32 << 20, int(cap * 0.85))))

    flops = 2 * b_pad * sum(dims[l] * dims[l + 1] for l in range(num_layers))
    bytes_accessed = b_pad * (d_in + output_dim) * 4 + w_bytes

    out = pl.pallas_call(
        _make_mlp_kernel(num_layers),
        out_shape=jax.ShapeDtypeStruct((b_pad, output_dim), jnp.float32),
        grid=grid,
        in_specs=in_specs,
        out_specs=out_specs,
        compiler_params=pltpu.CompilerParams(
            dimension_semantics=("parallel",),   # batch axis -> megacore shard
            vmem_limit_bytes=vmem_limit,
        ),
        cost_estimate=pl.CostEstimate(
            flops=flops, transcendentals=0, bytes_accessed=bytes_accessed),
    )(x, *flat_params)

    return out if b_pad == B else out[:B]


# ----------------------------------------------------------------------------
# Parameter init matching nn.Linear defaults: U(-1/sqrt(fan_in), 1/sqrt(fan_in))
# ----------------------------------------------------------------------------
def init_params(key, input_dim, hidden_layer_sizes=(100,), output_dim=1):
    sizes = [input_dim, *hidden_layer_sizes, output_dim]
    params = []
    for i in range(len(sizes) - 1):
        fan_in, fan_out = sizes[i], sizes[i + 1]
        key, kw, kb = jax.random.split(key, 3)
        bound = 1.0 / jnp.sqrt(jnp.asarray(fan_in, jnp.float32))
        w = jax.random.uniform(kw, (fan_out, fan_in), jnp.float32, -bound, bound)
        b = jax.random.uniform(kb, (fan_out,), jnp.float32, -bound, bound)
        params.append((w, b))
    return params


def _ref_forward_f32(x, torch_params):
    h = x
    for i, (w, b) in enumerate(torch_params):
        h = h @ w.T + b
        if i < len(torch_params) - 1:
            h = jnp.maximum(h, 0.0)
    return h


def _ref_forward_padded(x, padded_params, output_dim):
    """Mirrors the kernel math exactly (bf16 operands, f32 accumulate)."""
    h = x
    n = len(padded_params)
    for i, (w, b) in enumerate(padded_params):
        h = jnp.dot(h.astype(jnp.bfloat16), w,
                    preferred_element_type=jnp.float32) + b
        if i < n - 1:
            h = jnp.maximum(h, 0.0)
    return h[:, :output_dim]


if __name__ == "__main__":
    # TODO(synk): only forward() is implemented; fit()/predict() (Adam,
    # BCEWithLogitsLoss training loop, thresholding) are host-side logic with
    # no Pallas equivalent here.
    key = jax.random.PRNGKey(0)

    configs = [
        # (batch, input_dim, hidden_layer_sizes, output_dim)
        (64, 32, (100,), 1),     # module defaults
        (64, 32, (64, 32), 1),   # exercises the multi-layer generalization
    ]

    for batch, input_dim, hidden, output_dim in configs:
        key, kx, kp = jax.random.split(key, 3)
        x = jax.random.normal(kx, (batch, input_dim), jnp.float32)
        torch_params = init_params(kp, input_dim, hidden, output_dim)

        padded_params, dims = prepare_params(torch_params, input_dim)

        fwd = jax.jit(functools.partial(
            mlp_forward, padded_params=padded_params, dims=dims,
            output_dim=output_dim))
        out = jax.block_until_ready(fwd(x))
        assert out.shape == (batch, output_dim), out.shape

        # Tight check against a plain-JAX mirror of the kernel math.
        ref_bf16 = _ref_forward_padded(x, padded_params, output_dim)
        assert jnp.allclose(out, ref_bf16, atol=2e-3, rtol=2e-3), (
            f"kernel vs bf16 reference mismatch for config {hidden}")

        # Loose semantic check against the full-f32 PyTorch-layout reference
        # (bf16 operand rounding only).
        ref_f32 = _ref_forward_f32(x, torch_params)
        assert jnp.allclose(out, ref_f32, atol=5e-2, rtol=5e-2), (
            f"kernel vs f32 reference mismatch for config {hidden}")

    print("KERNEL_OK")
</pallas_src>

<mosaic_0001>
module attributes {stable_mosaic.version = 11 : i64} {
  func.func @kernel(%arg0: i32, %arg1: memref<64x32xf32, #tpu.memory_space<vmem>>, %arg2: memref<32x128xbf16, #tpu.memory_space<vmem>>, %arg3: memref<1x128xf32, #tpu.memory_space<vmem>>, %arg4: memref<128x128xbf16, #tpu.memory_space<vmem>>, %arg5: memref<1x128xf32, #tpu.memory_space<vmem>>, %arg6: memref<64x1xf32, #tpu.memory_space<vmem>>) attributes {dimension_semantics = [#tpu.dimension_semantics<parallel>], iteration_bounds = array<i64: 1>, scalar_prefetch = 0 : i64, scratch_operands = 0 : i64, tpu.core_type = #tpu.core_type<tc>, window_params = [{transform_indices = @transform_0, window_bounds = array<i64: 64, 32>}, {pipeline_mode = #tpu.pipeline_mode<synchronous>, transform_indices = @transform_1, window_bounds = array<i64: 32, 128>}, {pipeline_mode = #tpu.pipeline_mode<synchronous>, transform_indices = @transform_2, window_bounds = array<i64: 1, 128>}, {pipeline_mode = #tpu.pipeline_mode<synchronous>, transform_indices = @transform_3, window_bounds = array<i64: 128, 128>}, {pipeline_mode = #tpu.pipeline_mode<synchronous>, transform_indices = @transform_4, window_bounds = array<i64: 1, 128>}, {transform_indices = @transform_5, window_bounds = array<i64: 64, 1>}]} {
    %c0 = arith.constant 0 : index
    %c0_0 = arith.constant 0 : index
    %0 = vector.load %arg1[%c0, %c0_0] : memref<64x32xf32, #tpu.memory_space<vmem>>, vector<64x32xf32>
    %c0_1 = arith.constant 0 : index
    %c0_2 = arith.constant 0 : index
    %1 = vector.load %arg2[%c0_1, %c0_2] : memref<32x128xbf16, #tpu.memory_space<vmem>>, vector<32x128xbf16>
    %c0_3 = arith.constant 0 : index
    %c0_4 = arith.constant 0 : index
    %2 = vector.load %arg3[%c0_3, %c0_4] : memref<1x128xf32, #tpu.memory_space<vmem>>, vector<1x128xf32>
    %3 = arith.truncf %0 : vector<64x32xf32> to vector<64x32xbf16>
    %cst = arith.constant dense<0.000000e+00> : vector<64x128xf32>
    %4 = tpu.matmul %3, %1, %cst {dimension_numbers = #tpu.dot_dimension_numbers<[1], [0], [0], [1], [0, 0, 1, 1], [], []>} : vector<64x32xbf16>, vector<32x128xbf16>, vector<64x128xf32> -> vector<64x128xf32>
    %5 = vector.broadcast %2 : vector<1x128xf32> to vector<64x128xf32>
    %6 = arith.addf %4, %5 : vector<64x128xf32>
    %cst_5 = arith.constant 0.000000e+00 : f32
    %7 = vector.broadcast %cst_5 : f32 to vector<64x128xf32>
    %8 = arith.maximumf %6, %7 : vector<64x128xf32>
    %c0_6 = arith.constant 0 : index
    %c0_7 = arith.constant 0 : index
    %9 = vector.load %arg4[%c0_6, %c0_7] : memref<128x128xbf16, #tpu.memory_space<vmem>>, vector<128x128xbf16>
    %c0_8 = arith.constant 0 : index
    %c0_9 = arith.constant 0 : index
    %10 = vector.load %arg5[%c0_8, %c0_9] : memref<1x128xf32, #tpu.memory_space<vmem>>, vector<1x128xf32>
    %11 = arith.truncf %8 : vector<64x128xf32> to vector<64x128xbf16>
    %cst_10 = arith.constant dense<0.000000e+00> : vector<64x128xf32>
    %12 = tpu.matmul %11, %9, %cst_10 {dimension_numbers = #tpu.dot_dimension_numbers<[1], [0], [0], [1], [0, 0, 1, 1], [], []>} : vector<64x128xbf16>, vector<128x128xbf16>, vector<64x128xf32> -> vector<64x128xf32>
    %13 = vector.broadcast %10 : vector<1x128xf32> to vector<64x128xf32>
    %14 = arith.addf %12, %13 : vector<64x128xf32>
    %15 = vector.extract_strided_slice %14 {offsets = [0, 0], sizes = [64, 1], strides = [1, 1]} : vector<64x128xf32> to vector<64x1xf32>
    %c0_11 = arith.constant 0 : index
    %c0_12 = arith.constant 0 : index
    %16 = vector.load %arg6[%c0_11, %c0_12] : memref<64x1xf32, #tpu.memory_space<vmem>>, vector<64x1xf32>
    tpu.vector_store %arg6[%c0_11, %c0_12], %15 {strides = array<i32>} : memref<64x1xf32, #tpu.memory_space<vmem>>, vector<64x1xf32>,
    return
  }
  func.func @transform_0(%arg0: i32) -> (i32, i32) {
    %c0_i32 = arith.constant 0 : i32
    %c0_i32_0 = arith.constant 0 : i32
    return %arg0, %c0_i32 : i32, i32
  }
  func.func @transform_1(%arg0: i32) -> (i32, i32) {
    %c0_i32 = arith.constant 0 : i32
    %c0_i32_0 = arith.constant 0 : i32
    %c0_i32_1 = arith.constant 0 : i32
    return %c0_i32, %c0_i32_0 : i32, i32
  }
  func.func @transform_2(%arg0: i32) -> (i32, i32) {
    %c0_i32 = arith.constant 0 : i32
    %c0_i32_0 = arith.constant 0 : i32
    %c0_i32_1 = arith.constant 0 : i32
    return %c0_i32, %c0_i32_0 : i32, i32
  }
  func.func @transform_3(%arg0: i32) -> (i32, i32) {
    %c0_i32 = arith.constant 0 : i32
    %c0_i32_0 = arith.constant 0 : i32
    %c0_i32_1 = arith.constant 0 : i32
    return %c0_i32, %c0_i32_0 : i32, i32
  }
  func.func @transform_4(%arg0: i32) -> (i32, i32) {
    %c0_i32 = arith.constant 0 : i32
    %c0_i32_0 = arith.constant 0 : i32
    %c0_i32_1 = arith.constant 0 : i32
    return %c0_i32, %c0_i32_0 : i32, i32
  }
  func.func @transform_5(%arg0: i32) -> (i32, i32) {
    %c0_i32 = arith.constant 0 : i32
    %c0_i32_0 = arith.constant 0 : i32
    return %arg0, %c0_i32 : i32, i32
  }
}

</mosaic_0001>

<llo_original>
// kernel: mlp_forward.1
$region0: #{mlp_forward.1}
  #allocation0 [shape = 'u32[]', space=smem, size = 0x4, offset = 0x4, fixed_abs, tag = 'smem constant byte address 0x4 - core index']
  #allocation1 [shape = 'u32[144,128]{1,0:T(1,128)}', space=vmem, size = 0x12000, scoped, tag = 'internal scratch']
  %s0 = inlined_call_operand.vmem [shape: f32[64,32], index: 0, kind: input, shape index: {}]
  %s1 = inlined_call_operand.vmem [shape: bf16[32,128], index: 1, kind: input, shape index: {}]
  %s2 = inlined_call_operand.vmem [shape: f32[1,128], index: 2, kind: input, shape index: {}]
  %s3 = inlined_call_operand.vmem [shape: bf16[128,128], index: 3, kind: input, shape index: {}]
  %s4 = inlined_call_operand.vmem [shape: f32[1,128], index: 4, kind: input, shape index: {}]
  %s5 = inlined_call_operand.vmem [shape: f32[64,1], index: 5, kind: output, shape index: {}]
  %s6 = sld [smem:[#allocation0]]
  $region30: #{mlp_forward.1} parent=0
    _
  %s8 = ssub.s32 1, %s6
  %s9 = scalar_select 0, %s8, %s6
  // Predicated region
  $region2: #{mlp_forward.1} parent=0 // pred_check
    _
  $region3: #{mlp_forward.1} parent=0 // pred_check_branch
    %11 = sbr.rel (0) target = $region5
  $region4: #{mlp_forward.1} parent=0 // pred_region
    _
  $region5: #{mlp_forward.1} parent=0 // pred_fallthru
    _
  // Predicated region
  $region6: #{mlp_forward.1} parent=0 // pred_check
    _
  $region7: #{mlp_forward.1} parent=0 // pred_check_branch
    %13 = sbr.rel (0) target = $region9
  $region8: #{mlp_forward.1} parent=0 // pred_region
    _
  $region9: #{mlp_forward.1} parent=0 // pred_fallthru
    _
  // Predicated region
  $region10: #{mlp_forward.1} parent=0 // pred_check
    _
  $region11: #{mlp_forward.1} parent=0 // pred_check_branch
    %15 = sbr.rel (0) target = $region13
  $region12: #{mlp_forward.1} parent=0 // pred_region
    _
  $region13: #{mlp_forward.1} parent=0 // pred_fallthru
    _
  // Predicated region
  $region14: #{mlp_forward.1} parent=0 // pred_check
    _
  $region15: #{mlp_forward.1} parent=0 // pred_check_branch
    %17 = sbr.rel (0) target = $region17
  $region16: #{mlp_forward.1} parent=0 // pred_region
    _
  $region17: #{mlp_forward.1} parent=0 // pred_fallthru
    _
  // Predicated region
  $region18: #{mlp_forward.1} parent=0 // pred_check
    _
  $region19: #{mlp_forward.1} parent=0 // pred_check_branch
    %19 = sbr.rel (0) target = $region21
  $region20: #{mlp_forward.1} parent=0 // pred_region
    _
  $region21: #{mlp_forward.1} parent=0 // pred_fallthru
    _
  %v21 = vld [vmem:[%s0] sm:$0xff]
  %v22 = vld [vmem:[%s0 + $0x8] sm:$0xff]
  %v23 = vld [vmem:[%s0 + $0x10] sm:$0xff]
  %v24 = vld [vmem:[%s0 + $0x18] sm:$0xff]
  %v25 = vld [vmem:[%s0 + $0x20] sm:$0xff]
  %v26 = vld [vmem:[%s0 + $0x28] sm:$0xff]
  %v27 = vld [vmem:[%s0 + $0x30] sm:$0xff]
  %v28 = vld [vmem:[%s0 + $0x38] sm:$0xff]
  %v29 = vld [vmem:[%s1] sm:$0xf]
  %v30 = vld [vmem:[%s1 + $0x4] sm:$0xf]
  %v31 = vld [vmem:[%s1 + $0x8] sm:$0xf]
  %v32 = vld [vmem:[%s1 + $0xc] sm:$0xf]
  %v33 = vld [vmem:[%s2] sm:$0x1]
  %v34 = vpack.c.bf16 %v22, %v21
  %v35 = vpack.c.bf16 %v24, %v23
  %v36 = vpack.c.bf16 %v26, %v25
  %v37 = vpack.c.bf16 %v28, %v27
  %v39 = vlaneseq
  %v40 = vshrl.u32 %v39, 7
  %v41 = vsub.s32 0, %v40
  %v42 = vrot.slane %v33, %v41
  %v48 = vunpack.c.l.b16 %v29
  %v49 = vunpack.c.l.b16 %v30
  %v50 = vunpack.c.l.b16 %v31
  %v51 = vunpack.c.l.b16 %v32
  %v52 = vpack.c.b16 %v49, %v48
  %v53 = vpack.c.b16 %v51, %v50
  %vm56 = vcmask 261120
  %v58 = vsel %vm56, %v34, 0
  %v61 = vsel %vm56, %v35, 0
  %v64 = vsel %vm56, %v36, 0
  %v67 = vsel %vm56, %v37, 0
  %69 = vmatprep.subr.bf16.mxu0 0
  %70 = vmatpush1.bf16.msra.mxu0 %v52
  %71 = vmatprep.subr.bf16.mxu0 0
  %72 = vmatpush1.bf16.msra.mxu0 %v53
  %73 = vmatprep.subr.bf16.mxu0 0
  %74 = vmatpush1.bf16.msra.mxu0 0
  %75 = vmatprep.subr.bf16.mxu0 0
  %76 = vmatpush1.bf16.msra.mxu0 0
  %77 = vmatprep.subr.bf16.mxu0 0
  %78 = vmatpush1.bf16.msra.mxu0 0
  %79 = vmatprep.subr.bf16.mxu0 0
  %80 = vmatpush1.bf16.msra.mxu0 0
  %81 = vmatprep.subr.bf16.mxu0 0
  %82 = vmatpush1.bf16.msra.mxu0 0
  %83 = vmatprep.subr.bf16.mxu0 0
  %84 = vmatpush1.bf16.msra.mxu0 0
  %85 = vmatprep.subr.bf16.mxu0 0
  %86 = vmatpush1.bf16.msra.mxu0 0
  %87 = vmatprep.subr.bf16.mxu0 0
  %88 = vmatpush1.bf16.msra.mxu0 0
  %89 = vmatprep.subr.bf16.mxu0 0
  %90 = vmatpush1.bf16.msra.mxu0 0
  %91 = vmatprep.subr.bf16.mxu0 0
  %92 = vmatpush1.bf16.msra.mxu0 0
  %93 = vmatprep.subr.bf16.mxu0 0
  %94 = vmatpush1.bf16.msra.mxu0 0
  %95 = vmatprep.subr.bf16.mxu0 0
  %96 = vmatpush1.bf16.msra.mxu0 0
  %97 = vmatprep.subr.bf16.mxu0 0
  %98 = vmatpush1.bf16.msra.mxu0 0
  %99 = vmatprep.subr.bf16.mxu0 0
  %100 = vmatpush1.bf16.msra.mxu0 0
  %101 = vmatprep.mubr.bf16.mxu0 0
  %102 = vmatmul.mubr.bf16.gmra.mrb[0].mxu0 %v58
  %v103 = vpop.f32.mrb[0].mxu0
  %v104 = vadd.f32 %v42, %v103
  %v105 = vpop.f32.mrb[0].mxu0
  %v106 = vpop.f32.mrb[0].mxu0
  %v107 = vadd.f32 %v42, %v106
  %v108 = vpop.f32.mrb[0].mxu0
  %109 = vmatprep.mubr.bf16.mxu0 0
  %110 = vmatmul.mubr.bf16.gmra.mrb[0].mxu0 %v61
  %v111 = vpop.f32.mrb[0].mxu0
  %v112 = vadd.f32 %v42, %v111
  %v113 = vpop.f32.mrb[0].mxu0
  %v114 = vpop.f32.mrb[0].mxu0
  %v115 = vadd.f32 %v42, %v114
  %v116 = vpop.f32.mrb[0].mxu0
  %117 = vmatprep.mubr.bf16.mxu0 0
  %118 = vmatmul.mubr.bf16.gmra.mrb[0].mxu0 %v64
  %v119 = vpop.f32.mrb[0].mxu0
  %v120 = vadd.f32 %v42, %v119
  %v121 = vpop.f32.mrb[0].mxu0
  %v122 = vpop.f32.mrb[0].mxu0
  %v123 = vadd.f32 %v42, %v122
  %v124 = vpop.f32.mrb[0].mxu0
  %125 = vmatprep.mubr.bf16.mxu0 0
  %126 = vmatmul.mubr.bf16.gmra.mrb[0].mxu0 %v67
  %v127 = vpop.f32.mrb[0].mxu0
  %v128 = vadd.f32 %v42, %v127
  %v129 = vpop.f32.mrb[0].mxu0
  %v130 = vpop.f32.mrb[0].mxu0
  %v131 = vadd.f32 %v42, %v130
  %v132 = vpop.f32.mrb[0].mxu0
  %133 = vdwg.mxu0
  %v134 = vmax.f32 %v104, 0.0
  %v135 = vmax.f32 %v107, 0.0
  %v136 = vmax.f32 %v112, 0.0
  %v137 = vmax.f32 %v115, 0.0
  %v138 = vmax.f32 %v120, 0.0
  %v139 = vmax.f32 %v123, 0.0
  %v140 = vmax.f32 %v128, 0.0
  %v141 = vmax.f32 %v131, 0.0
  %v142 = vld [vmem:[%s3] sm:$0xf]
  %v143 = vld [vmem:[%s3 + $0x4] sm:$0xf]
  %v144 = vld [vmem:[%s3 + $0x8] sm:$0xf]
  %v145 = vld [vmem:[%s3 + $0xc] sm:$0xf]
  %v146 = vld [vmem:[%s3 + $0x10] sm:$0xf]
  %v147 = vld [vmem:[%s3 + $0x14] sm:$0xf]
  %v148 = vld [vmem:[%s3 + $0x18] sm:$0xf]
  %v149 = vld [vmem:[%s3 + $0x1c] sm:$0xf]
  %v150 = vld [vmem:[%s3 + $0x20] sm:$0xf]
  %v151 = vld [vmem:[%s3 + $0x24] sm:$0xf]
  %v152 = vld [vmem:[%s3 + $0x28] sm:$0xf]
  %v153 = vld [vmem:[%s3 + $0x2c] sm:$0xf]
  %v154 = vld [vmem:[%s3 + $0x30] sm:$0xf]
  %v155 = vld [vmem:[%s3 + $0x34] sm:$0xf]
  %v156 = vld [vmem:[%s3 + $0x38] sm:$0xf]
  %v157 = vld [vmem:[%s3 + $0x3c] sm:$0xf]
  %v158 = vld [vmem:[%s4] sm:$0x1]
  %v159 = vpack.c.bf16 %v135, %v134
  %v160 = vpack.c.bf16 %v137, %v136
  %v161 = vpack.c.bf16 %v139, %v138
  %v162 = vpack.c.bf16 %v141, %v140
  %v164 = vlaneseq
  %v165 = vshrl.u32 %v164, 7
  %v166 = vsub.s32 0, %v165
  %v167 = vrot.slane %v158, %v166
  %v185 = vunpack.c.l.b16 %v142
  %v186 = vunpack.c.l.b16 %v143
  %v187 = vunpack.c.l.b16 %v144
  %v188 = vunpack.c.l.b16 %v145
  %v189 = vunpack.c.l.b16 %v146
  %v190 = vunpack.c.l.b16 %v147
  %v191 = vunpack.c.l.b16 %v148
  %v192 = vunpack.c.l.b16 %v149
  %v193 = vunpack.c.l.b16 %v150
  %v194 = vunpack.c.l.b16 %v151
  %v195 = vunpack.c.l.b16 %v152
  %v196 = vunpack.c.l.b16 %v153
  %v197 = vunpack.c.l.b16 %v154
  %v198 = vunpack.c.l.b16 %v155
  %v199 = vunpack.c.l.b16 %v156
  %v200 = vunpack.c.l.b16 %v157
  %v201 = vpack.c.b16 %v186, %v185
  %v202 = vpack.c.b16 %v188, %v187
  %v203 = vpack.c.b16 %v190, %v189
  %v204 = vpack.c.b16 %v192, %v191
  %v205 = vpack.c.b16 %v194, %v193
  %v206 = vpack.c.b16 %v196, %v195
  %v207 = vpack.c.b16 %v198, %v197
  %v208 = vpack.c.b16 %v200, %v199
  %217 = vmatprep.subr.bf16.mxu0 0
  %218 = vmatpush1.bf16.msra.mxu0 %v201
  %219 = vmatprep.subr.bf16.mxu0 0
  %220 = vmatpush1.bf16.msra.mxu0 %v202
  %221 = vmatprep.subr.bf16.mxu0 0
  %222 = vmatpush1.bf16.msra.mxu0 %v203
  %223 = vmatprep.subr.bf16.mxu0 0
  %224 = vmatpush1.bf16.msra.mxu0 %v204
  %225 = vmatprep.subr.bf16.mxu0 0
  %226 = vmatpush1.bf16.msra.mxu0 %v205
  %227 = vmatprep.subr.bf16.mxu0 0
  %228 = vmatpush1.bf16.msra.mxu0 %v206
  %229 = vmatprep.subr.bf16.mxu0 0
  %230 = vmatpush1.bf16.msra.mxu0 %v207
  %231 = vmatprep.subr.bf16.mxu0 0
  %232 = vmatpush1.bf16.msra.mxu0 %v208
  %233 = vmatprep.subr.bf16.mxu0 0
  %234 = vmatpush1.bf16.msra.mxu0 0
  %235 = vmatprep.subr.bf16.mxu0 0
  %236 = vmatpush1.bf16.msra.mxu0 0
  %237 = vmatprep.subr.bf16.mxu0 0
  %238 = vmatpush1.bf16.msra.mxu0 0
  %239 = vmatprep.subr.bf16.mxu0 0
  %240 = vmatpush1.bf16.msra.mxu0 0
  %241 = vmatprep.subr.bf16.mxu0 0
  %242 = vmatpush1.bf16.msra.mxu0 0
  %243 = vmatprep.subr.bf16.mxu0 0
  %244 = vmatpush1.bf16.msra.mxu0 0
  %245 = vmatprep.subr.bf16.mxu0 0
  %246 = vmatpush1.bf16.msra.mxu0 0
  %247 = vmatprep.subr.bf16.mxu0 0
  %248 = vmatpush1.bf16.msra.mxu0 0
  %249 = vmatprep.mubr.bf16.mxu0 0
  %250 = vmatmul.mubr.bf16.gmra.mrb[0].mxu0 %v159
  %v251 = vpop.f32.mrb[0].mxu0
  %v252 = vadd.f32 %v167, %v251
  %v253 = vpop.f32.mrb[0].mxu0
  %v254 = vpop.f32.mrb[0].mxu0
  %v255 = vadd.f32 %v167, %v254
  %v256 = vpop.f32.mrb[0].mxu0
  %257 = vmatprep.mubr.bf16.mxu0 0
  %258 = vmatmul.mubr.bf16.gmra.mrb[0].mxu0 %v160
  %v259 = vpop.f32.mrb[0].mxu0
  %v260 = vadd.f32 %v167, %v259
  %v261 = vpop.f32.mrb[0].mxu0
  %v262 = vpop.f32.mrb[0].mxu0
  %v263 = vadd.f32 %v167, %v262
  %v264 = vpop.f32.mrb[0].mxu0
  %265 = vmatprep.mubr.bf16.mxu0 0
  %266 = vmatmul.mubr.bf16.gmra.mrb[0].mxu0 %v161
  %v267 = vpop.f32.mrb[0].mxu0
  %v268 = vadd.f32 %v167, %v267
  %v269 = vpop.f32.mrb[0].mxu0
  %v270 = vpop.f32.mrb[0].mxu0
  %v271 = vadd.f32 %v167, %v270
  %v272 = vpop.f32.mrb[0].mxu0
  %273 = vmatprep.mubr.bf16.mxu0 0
  %274 = vmatmul.mubr.bf16.gmra.mrb[0].mxu0 %v162
  %v275 = vpop.f32.mrb[0].mxu0
  %v276 = vadd.f32 %v167, %v275
  %v277 = vpop.f32.mrb[0].mxu0
  %v278 = vpop.f32.mrb[0].mxu0
  %v279 = vadd.f32 %v167, %v278
  %v280 = vpop.f32.mrb[0].mxu0
  %281 = vdwg.mxu0
  %vm282 = vcmask 7168
  %283 = vst.msk [vmem:[%s5] sm:$0xff] %vm282, %v252
  %284 = vst.msk [vmem:[%s5 + $0x8] sm:$0xff] %vm282, %v255
  %285 = vst.msk [vmem:[%s5 + $0x10] sm:$0xff] %vm282, %v260
  %286 = vst.msk [vmem:[%s5 + $0x18] sm:$0xff] %vm282, %v263
  %287 = vst.msk [vmem:[%s5 + $0x20] sm:$0xff] %vm282, %v268
  %288 = vst.msk [vmem:[%s5 + $0x28] sm:$0xff] %vm282, %v271
  %289 = vst.msk [vmem:[%s5 + $0x30] sm:$0xff] %vm282, %v276
  %290 = vst.msk [vmem:[%s5 + $0x38] sm:$0xff] %vm282, %v279
  // Predicated region
  $region22: #{mlp_forward.1} parent=0 // pred_check
    _
  $region23: #{mlp_forward.1} parent=0 // pred_check_branch
    %292 = sbr.rel (0) target = $region25
  $region24: #{mlp_forward.1} parent=0 // pred_region
    _
  $region25: #{mlp_forward.1} parent=0 // pred_fallthru
    _
  // Predicated region
  $region26: #{mlp_forward.1} parent=0 // pred_check
    _
  $region27: #{mlp_forward.1} parent=0 // pred_check_branch
    %294 = sbr.rel (0) target = $region29
  $region28: #{mlp_forward.1} parent=0 // pred_region
    _
  $region29: #{mlp_forward.1} parent=0 // pred_fallthru
    _

</llo_original>
